<compile_context>
chip_gen: v5e
topology: v5e:2x2
jax: 0.10.0
libtpu: 0.0.40
codegen_flags: <defaults>
</compile_context>

<pallas_src>
import functools

import jax
import jax.numpy as jnp
from jax.experimental import pallas as pl
from jax.experimental.pallas import tpu as pltpu


def _mlp_g_kernel(noise_ref, att_ref, w1n_ref, w1a_ref, b1_ref, w2_ref, b2_ref,
                  o_ref, acc_ref):
    # Grid = (batch_blocks, hidden_chunks); axis 1 is the fc2 reduction axis.
    # noise_ref: (TB, nz)        bf16    w1n_ref: (nz, Hc)       bf16
    # att_ref  : (TB, attSize)   bf16    w1a_ref: (attSize, Hc)  bf16
    # b1_ref   : (1, Hc)         f32     w2_ref : (Hc, D_out)    bf16
    # b2_ref   : (1, D_out)      f32     o_ref  : (TB, D_out)    f32
    # acc_ref  : (TB, D_out)     f32 VMEM scratch (persists across axis 1)
    j = pl.program_id(1)

    @pl.when(j == 0)
    def _():
        acc_ref[...] = jnp.zeros_like(acc_ref)

    # One h_chunk-wide slice of the fc1 output (split-K: noise part + att part).
    z1 = (
        jnp.dot(noise_ref[...], w1n_ref[...], preferred_element_type=jnp.float32)
        + jnp.dot(att_ref[...], w1a_ref[...], preferred_element_type=jnp.float32)
        + b1_ref[...]
    )
    a1 = jnp.where(z1 > 0, z1, 0.2 * z1)  # LeakyReLU(0.2)

    # Stream this chunk of fc2 into the f32 accumulator.
    acc_ref[...] += jnp.dot(a1.astype(w2_ref.dtype), w2_ref[...],
                            preferred_element_type=jnp.float32)

    @pl.when(j == pl.num_programs(1) - 1)
    def _():
        o_ref[...] = jnp.maximum(acc_ref[...] + b2_ref[...], 0.0).astype(o_ref.dtype)


def _largest_divisor_tile(total, candidates):
    for c in candidates:
        if c <= total and total % c == 0:
            return c
    return total


def mlp_g_text_emb_forward(noise, att, gen_labels, params, *,
                           block_b=None, h_chunk=None):
    """Pallas implementation of MLP_G_text_emb.forward.

    noise      : (B, nz)        float32
    att        : (B0, attSize)  float32, B = repeat_num * B0
    gen_labels : (B0, L)
    params     : dict with fc1_w (ngh, nz+attSize), fc1_b (ngh,),
                           fc2_w (resSize, ngh),    fc2_b (resSize,)
    returns (h, gen_labels_repeated)
    """
    B, nz = noise.shape
    n_att, att_size = att.shape
    assert B % n_att == 0
    repeat_num = B // n_att

    # Glue (matches torch .repeat(repeat_num, 1)). Only the (B, attSize) att
    # copy is materialized; the (B, nz+attSize) concat buffer is never built.
    att_rep = jnp.tile(att, (repeat_num, 1))
    labels_rep = jnp.tile(gen_labels, (repeat_num, 1))

    # Split fc1's weight along K into noise / att parts; pre-transpose to
    # [in, out]; biases as (1, out) rows.
    w1 = params["fc1_w"]                     # (H, nz + attSize), torch layout
    H = w1.shape[0]
    w1n = w1[:, :nz].T                       # (nz, H)
    w1a = w1[:, nz:].T                       # (attSize, H)
    b1 = params["fc1_b"][None, :].astype(jnp.float32)    # (1, H)
    w2 = params["fc2_w"].T                   # (H, D_out)
    b2 = params["fc2_b"][None, :].astype(jnp.float32)    # (1, D_out)
    D_out = w2.shape[1]

    # bf16 MXU operands, f32 accumulation inside the kernel.
    to_bf16 = lambda x: x.astype(jnp.bfloat16)
    noise_b = to_bf16(noise)
    att_b = to_bf16(att_rep)
    w1n_b = to_bf16(w1n)
    w1a_b = to_bf16(w1a)
    w2_b = to_bf16(w2)

    # Tile choices: batch tile up to 256 rows (multiple of 8/16), hidden
    # streamed in chunks of up to 512 columns (multiple of 128).
    if block_b is None:
        block_b = _largest_divisor_tile(B, (256, 128, 64, 32, 16, 8))
    if h_chunk is None:
        h_chunk = _largest_divisor_tile(H, (512, 1024, 256, 128))
    assert B % block_b == 0 and H % h_chunk == 0
    grid = (B // block_b, H // h_chunk)

    flops = 2 * B * (nz * H + att_size * H + H * D_out)
    bytes_accessed = (
        noise_b.size * 2 + att_b.size * 2 + w1n_b.size * 2 + w1a_b.size * 2
        + w2_b.size * 2 + b1.size * 4 + b2.size * 4 + B * D_out * 4
    )

    out = pl.pallas_call(
        _mlp_g_kernel,
        out_shape=jax.ShapeDtypeStruct((B, D_out), jnp.float32),
        grid_spec=pltpu.PrefetchScalarGridSpec(
            num_scalar_prefetch=0,
            grid=grid,
            in_specs=[
                pl.BlockSpec((block_b, nz), lambda i, j: (i, 0)),       # noise
                pl.BlockSpec((block_b, att_size), lambda i, j: (i, 0)), # att
                pl.BlockSpec((nz, h_chunk), lambda i, j: (0, j)),       # w1n
                pl.BlockSpec((att_size, h_chunk), lambda i, j: (0, j)), # w1a
                pl.BlockSpec((1, h_chunk), lambda i, j: (0, j)),        # b1
                pl.BlockSpec((h_chunk, D_out), lambda i, j: (j, 0)),    # w2
                pl.BlockSpec((1, D_out), lambda i, j: (0, 0)),          # b2
            ],
            out_specs=pl.BlockSpec((block_b, D_out), lambda i, j: (i, 0)),
            scratch_shapes=[pltpu.VMEM((block_b, D_out), jnp.float32)],
        ),
        compiler_params=pltpu.CompilerParams(
            dimension_semantics=("parallel", "arbitrary"),
            vmem_limit_bytes=48 * 1024 * 1024,
        ),
        cost_estimate=pl.CostEstimate(
            flops=flops, transcendentals=0, bytes_accessed=bytes_accessed),
    )(noise_b, att_b, w1n_b, w1a_b, b1, w2_b, b2)

    return out, labels_rep


def _reference_forward(noise, att, gen_labels, params):
    repeat_num = noise.shape[0] // att.shape[0]
    att_rep = jnp.tile(att, (repeat_num, 1))
    labels_rep = jnp.tile(gen_labels, (repeat_num, 1))
    h = jnp.concatenate([noise, att_rep], axis=1)
    z1 = h @ params["fc1_w"].T + params["fc1_b"]
    a1 = jnp.where(z1 > 0, z1, 0.2 * z1)
    z2 = a1 @ params["fc2_w"].T + params["fc2_b"]
    return jnp.maximum(z2, 0.0), labels_rep


if __name__ == "__main__":
    # Small shapes consistent with the module (attSize=512, nz=300, ngh=4096,
    # resSize=1024 in the original; scaled down here but large enough to
    # exercise both grid axes: batch tiling and hidden-chunk accumulation).
    attSize = 256
    nz = 128
    ngh = 512
    resSize = 256
    n_att = 4          # number of distinct attribute rows
    repeat_num = 8
    B = n_att * repeat_num   # noise batch = 32
    n_labels = 8             # label width

    key = jax.random.PRNGKey(0)
    k_noise, k_att, k_lab, k_w1, k_b1, k_w2, k_b2 = jax.random.split(key, 7)

    noise = jax.random.normal(k_noise, (B, nz), dtype=jnp.float32)
    att = jax.random.normal(k_att, (n_att, attSize), dtype=jnp.float32)
    gen_labels = jax.random.normal(k_lab, (n_att, n_labels), dtype=jnp.float32)

    # Deterministic synthetic parameters (PyTorch Linear layout: [out, in]).
    # TODO(synk): the real module loads these from a torch checkpoint on disk.
    params = {
        "fc1_w": 0.02 * jax.random.normal(k_w1, (ngh, nz + attSize), dtype=jnp.float32),
        "fc1_b": 0.01 * jax.random.normal(k_b1, (ngh,), dtype=jnp.float32),
        "fc2_w": 0.02 * jax.random.normal(k_w2, (resSize, ngh), dtype=jnp.float32),
        "fc2_b": 0.01 * jax.random.normal(k_b2, (resSize,), dtype=jnp.float32),
    }

    # Explicit small tiles so the test exercises grid = (2, 4).
    fwd = jax.jit(functools.partial(
        mlp_g_text_emb_forward, params=params, block_b=16, h_chunk=128))
    h, labels_out = fwd(noise, att, gen_labels)
    jax.block_until_ready(h)
    jax.block_until_ready(labels_out)

    h_ref, labels_ref = _reference_forward(noise, att, gen_labels, params)
    assert h.shape == (B, resSize)
    assert labels_out.shape == (B, n_labels)
    # bf16 MXU operands with f32 accumulation vs full-f32 reference.
    assert jnp.allclose(h, h_ref, atol=3e-2, rtol=3e-2)
    assert jnp.allclose(labels_out, labels_ref)

    print("KERNEL_OK")
</pallas_src>

<mosaic_0001>
module attributes {stable_mosaic.version = 11 : i64} {
  func.func @_mlp_g_kernel(%arg0: i32, %arg1: i32, %arg2: memref<16x128xbf16, #tpu.memory_space<vmem>>, %arg3: memref<16x256xbf16, #tpu.memory_space<vmem>>, %arg4: memref<128x128xbf16, #tpu.memory_space<vmem>>, %arg5: memref<256x128xbf16, #tpu.memory_space<vmem>>, %arg6: memref<1x128xf32, #tpu.memory_space<vmem>>, %arg7: memref<128x256xbf16, #tpu.memory_space<vmem>>, %arg8: memref<1x256xf32, #tpu.memory_space<vmem>>, %arg9: memref<16x256xf32, #tpu.memory_space<vmem>>, %arg10: memref<16x256xf32, #tpu.memory_space<vmem>>) attributes {dimension_semantics = [#tpu.dimension_semantics<parallel>, #tpu.dimension_semantics<arbitrary>], iteration_bounds = array<i64: 2, 4>, scalar_prefetch = 0 : i64, scratch_operands = 1 : i64, tpu.core_type = #tpu.core_type<tc>, window_params = [{transform_indices = @transform_0, window_bounds = array<i64: 16, 128>}, {transform_indices = @transform_1, window_bounds = array<i64: 16, 256>}, {transform_indices = @transform_2, window_bounds = array<i64: 128, 128>}, {transform_indices = @transform_3, window_bounds = array<i64: 256, 128>}, {transform_indices = @transform_4, window_bounds = array<i64: 1, 128>}, {transform_indices = @transform_5, window_bounds = array<i64: 128, 256>}, {pipeline_mode = #tpu.pipeline_mode<synchronous>, transform_indices = @transform_6, window_bounds = array<i64: 1, 256>}, {transform_indices = @transform_7, window_bounds = array<i64: 16, 256>}]} {
    %c0_i32 = arith.constant 0 : i32
    %0 = arith.cmpi eq, %arg1, %c0_i32 : i32
    %1 = arith.extui %0 : i1 to i32
    %c0_i32_0 = arith.constant 0 : i32
    %2 = arith.cmpi ne, %1, %c0_i32_0 : i32
    scf.if %2 {
      %cst_21 = arith.constant 0.000000e+00 : f32
      %27 = vector.broadcast %cst_21 : f32 to vector<16x256xf32>
      %c0_22 = arith.constant 0 : index
      %c0_23 = arith.constant 0 : index
      %28 = vector.load %arg10[%c0_22, %c0_23] : memref<16x256xf32, #tpu.memory_space<vmem>>, vector<16x256xf32>
      tpu.vector_store %arg10[%c0_22, %c0_23], %27 {strides = array<i32>} : memref<16x256xf32, #tpu.memory_space<vmem>>, vector<16x256xf32>,
    } else {
    }
    %c0 = arith.constant 0 : index
    %c0_1 = arith.constant 0 : index
    %3 = vector.load %arg2[%c0, %c0_1] : memref<16x128xbf16, #tpu.memory_space<vmem>>, vector<16x128xbf16>
    %c0_2 = arith.constant 0 : index
    %c0_3 = arith.constant 0 : index
    %4 = vector.load %arg4[%c0_2, %c0_3] : memref<128x128xbf16, #tpu.memory_space<vmem>>, vector<128x128xbf16>
    %cst = arith.constant dense<0.000000e+00> : vector<16x128xf32>
    %5 = tpu.matmul %3, %4, %cst {dimension_numbers = #tpu.dot_dimension_numbers<[1], [0], [0], [1], [0, 0, 1, 1], [], []>} : vector<16x128xbf16>, vector<128x128xbf16>, vector<16x128xf32> -> vector<16x128xf32>
    %c0_4 = arith.constant 0 : index
    %c0_5 = arith.constant 0 : index
    %6 = vector.load %arg3[%c0_4, %c0_5] : memref<16x256xbf16, #tpu.memory_space<vmem>>, vector<16x256xbf16>
    %c0_6 = arith.constant 0 : index
    %c0_7 = arith.constant 0 : index
    %7 = vector.load %arg5[%c0_6, %c0_7] : memref<256x128xbf16, #tpu.memory_space<vmem>>, vector<256x128xbf16>
    %cst_8 = arith.constant dense<0.000000e+00> : vector<16x128xf32>
    %8 = tpu.matmul %6, %7, %cst_8 {dimension_numbers = #tpu.dot_dimension_numbers<[1], [0], [0], [1], [0, 0, 1, 1], [], []>} : vector<16x256xbf16>, vector<256x128xbf16>, vector<16x128xf32> -> vector<16x128xf32>
    %9 = arith.addf %5, %8 : vector<16x128xf32>
    %c0_9 = arith.constant 0 : index
    %c0_10 = arith.constant 0 : index
    %10 = vector.load %arg6[%c0_9, %c0_10] : memref<1x128xf32, #tpu.memory_space<vmem>>, vector<1x128xf32>
    %11 = vector.broadcast %10 : vector<1x128xf32> to vector<16x128xf32>
    %12 = arith.addf %9, %11 : vector<16x128xf32>
    %cst_11 = arith.constant 0.000000e+00 : f32
    %13 = vector.broadcast %cst_11 : f32 to vector<16x128xf32>
    %14 = arith.cmpf ogt, %12, %13 : vector<16x128xf32>
    %cst_12 = arith.constant 2.000000e-01 : f32
    %15 = vector.broadcast %cst_12 : f32 to vector<16x128xf32>
    %16 = arith.mulf %15, %12 : vector<16x128xf32>
    %17 = arith.select %14, %12, %16 : vector<16x128xi1>, vector<16x128xf32>
    %c0_13 = arith.constant 0 : index
    %c0_14 = arith.constant 0 : index
    %18 = vector.load %arg10[%c0_13, %c0_14] : memref<16x256xf32, #tpu.memory_space<vmem>>, vector<16x256xf32>
    %19 = arith.truncf %17 : vector<16x128xf32> to vector<16x128xbf16>
    %c0_15 = arith.constant 0 : index
    %c0_16 = arith.constant 0 : index
    %20 = vector.load %arg7[%c0_15, %c0_16] : memref<128x256xbf16, #tpu.memory_space<vmem>>, vector<128x256xbf16>
    %cst_17 = arith.constant dense<0.000000e+00> : vector<16x256xf32>
    %21 = tpu.matmul %19, %20, %cst_17 {dimension_numbers = #tpu.dot_dimension_numbers<[1], [0], [0], [1], [0, 0, 1, 1], [], []>} : vector<16x128xbf16>, vector<128x256xbf16>, vector<16x256xf32> -> vector<16x256xf32>
    %22 = arith.addf %18, %21 : vector<16x256xf32>
    %c0_18 = arith.constant 0 : index
    %c0_19 = arith.constant 0 : index
    %23 = vector.load %arg10[%c0_18, %c0_19] : memref<16x256xf32, #tpu.memory_space<vmem>>, vector<16x256xf32>
    tpu.vector_store %arg10[%c0_18, %c0_19], %22 {strides = array<i32>} : memref<16x256xf32, #tpu.memory_space<vmem>>, vector<16x256xf32>,
    %c3_i32 = arith.constant 3 : i32
    %24 = arith.cmpi eq, %arg1, %c3_i32 : i32
    %25 = arith.extui %24 : i1 to i32
    %c0_i32_20 = arith.constant 0 : i32
    %26 = arith.cmpi ne, %25, %c0_i32_20 : i32
    scf.if %26 {
      %c0_21 = arith.constant 0 : index
      %c0_22 = arith.constant 0 : index
      %27 = vector.load %arg10[%c0_21, %c0_22] : memref<16x256xf32, #tpu.memory_space<vmem>>, vector<16x256xf32>
      %c0_23 = arith.constant 0 : index
      %c0_24 = arith.constant 0 : index
      %28 = vector.load %arg8[%c0_23, %c0_24] : memref<1x256xf32, #tpu.memory_space<vmem>>, vector<1x256xf32>
      %29 = vector.broadcast %28 : vector<1x256xf32> to vector<16x256xf32>
      %30 = arith.addf %27, %29 : vector<16x256xf32>
      %cst_25 = arith.constant 0.000000e+00 : f32
      %31 = vector.broadcast %cst_25 : f32 to vector<16x256xf32>
      %32 = arith.maximumf %30, %31 : vector<16x256xf32>
      %c0_26 = arith.constant 0 : index
      %c0_27 = arith.constant 0 : index
      %33 = vector.load %arg9[%c0_26, %c0_27] : memref<16x256xf32, #tpu.memory_space<vmem>>, vector<16x256xf32>
      tpu.vector_store %arg9[%c0_26, %c0_27], %32 {strides = array<i32>} : memref<16x256xf32, #tpu.memory_space<vmem>>, vector<16x256xf32>,
    } else {
    }
    return
  }
  func.func @transform_0(%arg0: i32, %arg1: i32) -> (i32, i32) {
    %c0_i32 = arith.constant 0 : i32
    %c0_i32_0 = arith.constant 0 : i32
    return %arg0, %c0_i32 : i32, i32
  }
  func.func @transform_1(%arg0: i32, %arg1: i32) -> (i32, i32) {
    %c0_i32 = arith.constant 0 : i32
    %c0_i32_0 = arith.constant 0 : i32
    return %arg0, %c0_i32 : i32, i32
  }
  func.func @transform_2(%arg0: i32, %arg1: i32) -> (i32, i32) {
    %c0_i32 = arith.constant 0 : i32
    %c0_i32_0 = arith.constant 0 : i32
    return %c0_i32, %arg1 : i32, i32
  }
  func.func @transform_3(%arg0: i32, %arg1: i32) -> (i32, i32) {
    %c0_i32 = arith.constant 0 : i32
    %c0_i32_0 = arith.constant 0 : i32
    return %c0_i32, %arg1 : i32, i32
  }
  func.func @transform_4(%arg0: i32, %arg1: i32) -> (i32, i32) {
    %c0_i32 = arith.constant 0 : i32
    %c0_i32_0 = arith.constant 0 : i32
    return %c0_i32, %arg1 : i32, i32
  }
  func.func @transform_5(%arg0: i32, %arg1: i32) -> (i32, i32) {
    %c0_i32 = arith.constant 0 : i32
    %c0_i32_0 = arith.constant 0 : i32
    return %arg1, %c0_i32 : i32, i32
  }
  func.func @transform_6(%arg0: i32, %arg1: i32) -> (i32, i32) {
    %c0_i32 = arith.constant 0 : i32
    %c0_i32_0 = arith.constant 0 : i32
    %c0_i32_1 = arith.constant 0 : i32
    return %c0_i32, %c0_i32_0 : i32, i32
  }
  func.func @transform_7(%arg0: i32, %arg1: i32) -> (i32, i32) {
    %c0_i32 = arith.constant 0 : i32
    %c0_i32_0 = arith.constant 0 : i32
    return %arg0, %c0_i32 : i32, i32
  }
}

</mosaic_0001>

<llo_original>
// kernel: mlp_g_text_emb_forward.1
$region0: #{mlp_g_text_emb_forward.1}
  #allocation0 [shape = 'u32[]', space=smem, size = 0x4, offset = 0x4, fixed_abs, tag = 'smem constant byte address 0x4 - core index']
  #allocation1 [shape = 'u32[72,128]{1,0:T(1,128)}', space=vmem, size = 0x9000, scoped, tag = 'internal scratch']
  #allocation2 [shape = 'f32[16,256]{1,0:T(8,128)}', space=vmem, size = 0x4000, scoped, tag = 'scratch operand']
  %s0 = inlined_call_operand.vmem [shape: bf16[32,128], index: 0, kind: input, shape index: {}]
  %s1 = inlined_call_operand.vmem [shape: bf16[32,256], index: 1, kind: input, shape index: {}]
  %s2 = inlined_call_operand.hbm [shape: bf16[128,512], index: 2, kind: input, shape index: {}]
  %s3 = inlined_call_operand.hbm [shape: bf16[256,512], index: 3, kind: input, shape index: {}]
  %s4 = inlined_call_operand.vmem [shape: f32[1,512], index: 4, kind: input, shape index: {}]
  %s5 = inlined_call_operand.hbm [shape: bf16[512,256], index: 5, kind: input, shape index: {}]
  %s6 = inlined_call_operand.vmem [shape: f32[1,256], index: 6, kind: input, shape index: {}]
  %s7 = inlined_call_operand.hbm [shape: f32[32,256], index: 7, kind: output, shape index: {}]
  %s8 = sld [smem:[#allocation0]]
  $region81: #{mlp_g_text_emb_forward.1} parent=0
    _
  %s10 = ssub.s32 1, %s8
  %s11 = scalar_select 0, %s10, %s8
  $region1: #{mlp_g_text_emb_forward.1} parent=0
    #allocation3 [shape = 'u8[65536]{0}', space=vmem, size = 0x10000, scoped, tag = 'input window, operand 2']
    #allocation4 [shape = 's32[2]{0}', space=sflag, size = 0x8, scoped, tag = 'scoped memory for mlp_g_text_emb_forward.1']
    #allocation5 [shape = 's32[2]{0}', space=sflag, size = 0x8, scoped, tag = 'scoped memory for mlp_g_text_emb_forward.1']
    #allocation6 [shape = 'u8[131072]{0}', space=vmem, size = 0x20000, scoped, tag = 'input window, operand 3']
    #allocation7 [shape = 's32[2]{0}', space=sflag, size = 0x8, scoped, tag = 'scoped memory for mlp_g_text_emb_forward.1']
    #allocation8 [shape = 'u8[131072]{0}', space=vmem, size = 0x20000, scoped, tag = 'input window, operand 5']
    #allocation9 [shape = 'u8[32768]{0}', space=vmem, size = 0x8000, scoped, tag = 'output window, operand 0']
    %12 = vsyncpa [#allocation4], 0
    %s13 = scalar_lea.sflag [#allocation4], 1
    %14 = vsyncpa %s13, 0
    %15 = vsyncpa [#allocation7], 0
    %s16 = scalar_lea.sflag [#allocation7], 1
    %17 = vsyncpa %s16, 0
    %18 = vsyncpa [#allocation5], 0
    %s19 = scalar_lea.sflag [#allocation5], 1
    %20 = vsyncpa %s19, 0
    loop: start=0, step=1, limit=10
    $region2: #{mlp_g_text_emb_forward.1} parent=1 // loop_pre_header
      _
    $region3: #{mlp_g_text_emb_forward.1} parent=1 // loop_header
      %s22 = sphi 0, %s26
      %p23 = scmp.ge.s32.totalorder %s22, 10
      %s29 = sphi 0, %s41
      %s30 = sphi 0, %s37
      %s31 = sphi 0, %s29
      %s32 = sphi 0, %s30
      %s33 = sphi 0, %s31
      %s34 = sphi 0, %s32
      %s44 = sphi 0, %s46
      %s47 = sphi 0, %s44
      %s48 = sphi 0, %s47
      %s64 = sphi 0, %s48
      %s70 = sphi 0, %s72
      %s73 = sphi 0, %s70
      %s74 = sphi 0, %s73
      %s90 = sphi 0, %s74
      %s96 = sphi 0, %s98
      %s99 = sphi 0, %s96
      %s100 = sphi 0, %s99
      %s116 = sphi 0, %s100
      %s122 = sphi 0, %s124
      %s125 = sphi 0, %s122
      %s126 = sphi 0, %s125
      %s142 = sphi 0, %s126
      %s148 = sphi 0, %s150
      %s151 = sphi 0, %s148
      %s152 = sphi 0, %s151
      %s168 = sphi 0, %s152
      %s174 = sphi 0, %s176
      %s177 = sphi 0, %s174
      %s178 = sphi 0, %s177
      %s194 = sphi 0, %s178
      %s198 = sphi 0, %s198
      %s200 = sphi 0, %s198
      %s201 = sphi 0, %s200
      %s215 = sphi 0, %s201
      %s221 = sphi 0, %s223
      %s224 = sphi 0, %s221
      %s225 = sphi 0, %s224
      %s241 = sphi 0, %s225
    $region4: #{mlp_g_text_emb_forward.1} parent=1 // loop_header_branch
      %25 = sbr.rel (%p23) target = $region8
    $region5: #{mlp_g_text_emb_forward.1} parent=1 // loop_body
      %s27 = ssub.s32 %s22, 1
      %s28 = ssub.s32 %s22, 2
      %s35 = sadd.s32 1, %s30
      %p36 = scmp.ge.s32.totalorder %s35, 4
      %s37 = scalar_select %p36, 0, %s35
      %s38 = sadd.s32 1, %s29
      %s39 = scalar_select %p36, %s38, %s29
      %p40 = scmp.ge.s32.totalorder %s39, 2
      %s41 = scalar_select %p40, 0, %s39
      %s42 = ssub.s32 %s29, %s41
      %p43 = scmp.eq.s32.totalorder %s42, 0
      %s45 = sadd.s32 %s44, 1
      %s46 = scalar_select %p43, %s44, %s45
      %p49 = pneg %p43
      %p50 = scmp.eq.s32.totalorder %s22, 7
      %p51 = por %p49, %p50
      %p52 = scmp.ne.s32.totalorder %s44, %s47
      %p53 = scmp.eq.s32.totalorder %s22, 0
      %p54 = por %p52, %p53
      %p55 = scmp.ne.s32.totalorder %s44, %s47
      %p56 = scmp.eq.s32.totalorder %s27, 7
      %p57 = por %p55, %p56
      %p58 = scmp.ne.s32.totalorder %s47, %s48
      %p59 = scmp.eq.s32.totalorder %s27, 0
      %p60 = por %p58, %p59
      %p61 = scmp.ne.s32.totalorder %s47, %s48
      %p62 = scmp.eq.s32.totalorder %s28, 7
      %p63 = por %p61, %p62
      %p65 = scmp.ne.s32.totalorder %s48, %s64
      %p66 = scmp.eq.s32.totalorder %s28, 0
      %p67 = por %p65, %p66
      %s68 = ssub.s32 %s29, %s41
      %p69 = scmp.eq.s32.totalorder %s68, 0
      %s71 = sadd.s32 %s70, 1
      %s72 = scalar_select %p69, %s70, %s71
      %p75 = pneg %p69
      %p76 = scmp.eq.s32.totalorder %s22, 7
      %p77 = por %p75, %p76
      %p78 = scmp.ne.s32.totalorder %s70, %s73
      %p79 = scmp.eq.s32.totalorder %s22, 0
      %p80 = por %p78, %p79
      %p81 = scmp.ne.s32.totalorder %s70, %s73
      %p82 = scmp.eq.s32.totalorder %s27, 7
      %p83 = por %p81, %p82
      %p84 = scmp.ne.s32.totalorder %s73, %s74
      %p85 = scmp.eq.s32.totalorder %s27, 0
      %p86 = por %p84, %p85
      %p87 = scmp.ne.s32.totalorder %s73, %s74
      %p88 = scmp.eq.s32.totalorder %s28, 7
      %p89 = por %p87, %p88
      %p91 = scmp.ne.s32.totalorder %s74, %s90
      %p92 = scmp.eq.s32.totalorder %s28, 0
      %p93 = por %p91, %p92
      %s94 = ssub.s32 %s30, %s37
      %p95 = scmp.eq.s32.totalorder %s94, 0
      %s97 = sadd.s32 %s96, 1
      %s98 = scalar_select %p95, %s96, %s97
      %p101 = pneg %p95
      %p102 = scmp.eq.s32.totalorder %s22, 7
      %p103 = por %p101, %p102
      %p104 = scmp.ne.s32.totalorder %s96, %s99
      %p105 = scmp.eq.s32.totalorder %s22, 0
      %p106 = por %p104, %p105
      %p107 = scmp.ne.s32.totalorder %s96, %s99
      %p108 = scmp.eq.s32.totalorder %s27, 7
      %p109 = por %p107, %p108
      %p110 = scmp.ne.s32.totalorder %s99, %s100
      %p111 = scmp.eq.s32.totalorder %s27, 0
      %p112 = por %p110, %p111
      %p113 = scmp.ne.s32.totalorder %s99, %s100
      %p114 = scmp.eq.s32.totalorder %s28, 7
      %p115 = por %p113, %p114
      %p117 = scmp.ne.s32.totalorder %s100, %s116
      %p118 = scmp.eq.s32.totalorder %s28, 0
      %p119 = por %p117, %p118
      %s120 = ssub.s32 %s30, %s37
      %p121 = scmp.eq.s32.totalorder %s120, 0
      %s123 = sadd.s32 %s122, 1
      %s124 = scalar_select %p121, %s122, %s123
      %p127 = pneg %p121
      %p128 = scmp.eq.s32.totalorder %s22, 7
      %p129 = por %p127, %p128
      %p130 = scmp.ne.s32.totalorder %s122, %s125
      %p131 = scmp.eq.s32.totalorder %s22, 0
      %p132 = por %p130, %p131
      %p133 = scmp.ne.s32.totalorder %s122, %s125
      %p134 = scmp.eq.s32.totalorder %s27, 7
      %p135 = por %p133, %p134
      %p136 = scmp.ne.s32.totalorder %s125, %s126
      %p137 = scmp.eq.s32.totalorder %s27, 0
      %p138 = por %p136, %p137
      %p139 = scmp.ne.s32.totalorder %s125, %s126
      %p140 = scmp.eq.s32.totalorder %s28, 7
      %p141 = por %p139, %p140
      %p143 = scmp.ne.s32.totalorder %s126, %s142
      %p144 = scmp.eq.s32.totalorder %s28, 0
      %p145 = por %p143, %p144
      %s146 = ssub.s32 %s30, %s37
      %p147 = scmp.eq.s32.totalorder %s146, 0
      %s149 = sadd.s32 %s148, 1
      %s150 = scalar_select %p147, %s148, %s149
      %p153 = pneg %p147
      %p154 = scmp.eq.s32.totalorder %s22, 7
      %p155 = por %p153, %p154
      %p156 = scmp.ne.s32.totalorder %s148, %s151
      %p157 = scmp.eq.s32.totalorder %s22, 0
      %p158 = por %p156, %p157
      %p159 = scmp.ne.s32.totalorder %s148, %s151
      %p160 = scmp.eq.s32.totalorder %s27, 7
      %p161 = por %p159, %p160
      %p162 = scmp.ne.s32.totalorder %s151, %s152
      %p163 = scmp.eq.s32.totalorder %s27, 0
      %p164 = por %p162, %p163
      %p165 = scmp.ne.s32.totalorder %s151, %s152
      %p166 = scmp.eq.s32.totalorder %s28, 7
      %p167 = por %p165, %p166
      %p169 = scmp.ne.s32.totalorder %s152, %s168
      %p170 = scmp.eq.s32.totalorder %s28, 0
      %p171 = por %p169, %p170
      %s172 = ssub.s32 %s30, %s37
      %p173 = scmp.eq.s32.totalorder %s172, 0
      %s175 = sadd.s32 %s174, 1
      %s176 = scalar_select %p173, %s174, %s175
      %p179 = pneg %p173
      %p180 = scmp.eq.s32.totalorder %s22, 7
      %p181 = por %p179, %p180
      %p182 = scmp.ne.s32.totalorder %s174, %s177
      %p183 = scmp.eq.s32.totalorder %s22, 0
      %p184 = por %p182, %p183
      %p185 = scmp.ne.s32.totalorder %s174, %s177
      %p186 = scmp.eq.s32.totalorder %s27, 7
      %p187 = por %p185, %p186
      %p188 = scmp.ne.s32.totalorder %s177, %s178
      %p189 = scmp.eq.s32.totalorder %s27, 0
      %p190 = por %p188, %p189
      %p191 = scmp.ne.s32.totalorder %s177, %s178
      %p192 = scmp.eq.s32.totalorder %s28, 7
      %p193 = por %p191, %p192
      %p195 = scmp.ne.s32.totalorder %s178, %s194
      %p196 = scmp.eq.s32.totalorder %s28, 0
      %p197 = por %p195, %p196
      %s199 = sadd.s32 %s198, 1
      %p202 = scmp.eq.s32.totalorder %s22, 7
      %p203 = scmp.ne.s32.totalorder %s198, %s200
      %p204 = scmp.eq.s32.totalorder %s22, 0
      %p205 = por %p203, %p204
      %p206 = scmp.ne.s32.totalorder %s198, %s200
      %p207 = scmp.eq.s32.totalorder %s27, 7
      %p208 = por %p206, %p207
      %p209 = scmp.ne.s32.totalorder %s200, %s201
      %p210 = scmp.eq.s32.totalorder %s27, 0
      %p211 = por %p209, %p210
      %p212 = scmp.ne.s32.totalorder %s200, %s201
      %p213 = scmp.eq.s32.totalorder %s28, 7
      %p214 = por %p212, %p213
      %p216 = scmp.ne.s32.totalorder %s201, %s215
      %p217 = scmp.eq.s32.totalorder %s28, 0
      %p218 = por %p216, %p217
      %s219 = ssub.s32 %s29, %s41
      %p220 = scmp.eq.s32.totalorder %s219, 0
      %s222 = sadd.s32 %s221, 1
      %s223 = scalar_select %p220, %s221, %s222
      %p226 = pneg %p220
      %p227 = scmp.eq.s32.totalorder %s22, 7
      %p228 = por %p226, %p227
      %p229 = scmp.ne.s32.totalorder %s221, %s224
      %p230 = scmp.eq.s32.totalorder %s22, 0
      %p231 = por %p229, %p230
      %p232 = scmp.ne.s32.totalorder %s221, %s224
      %p233 = scmp.eq.s32.totalorder %s27, 7
      %p234 = por %p232, %p233
      %p235 = scmp.ne.s32.totalorder %s224, %s225
      %p236 = scmp.eq.s32.totalorder %s27, 0
      %p237 = por %p235, %p236
      %p238 = scmp.ne.s32.totalorder %s224, %s225
      %p239 = scmp.eq.s32.totalorder %s28, 7
      %p240 = por %p238, %p239
      %p242 = scmp.ne.s32.totalorder %s225, %s241
      %p243 = scmp.eq.s32.totalorder %s28, 0
      %p244 = por %p242, %p243
      %p245 = scmp.le.s32.totalorder 1, %s22
      %p246 = scmp.lt.s32.totalorder %s22, 9
      %p247 = pnand %p245, %p246
      %p248 = pneg %p247
      // Predicated region
      $region9: #{mlp_g_text_emb_forward.1} parent=5 // pred_check
        _
      $region10: #{mlp_g_text_emb_forward.1} parent=5 // pred_check_branch
        %250 = sbr.rel (%p247) target = $region12
      $region11: #{mlp_g_text_emb_forward.1} parent=5 // pred_region
        %s251 = ssub.s32 %s22, 1
        // Predicated region
        $region13: #{mlp_g_text_emb_forward.1} parent=11 // pred_check
          %p252 = pneg %p211
        $region14: #{mlp_g_text_emb_forward.1} parent=11 // pred_check_branch
          %254 = sbr.rel (%p252) target = $region16
        $region15: #{mlp_g_text_emb_forward.1} parent=11 // pred_region
          _
        $region16: #{mlp_g_text_emb_forward.1} parent=11 // pred_fallthru
          _
      $region12: #{mlp_g_text_emb_forward.1} parent=5 // pred_fallthru
        _
      %p255 = scmp.lt.s32.totalorder %s22, 8
      // Predicated region
      $region17: #{mlp_g_text_emb_forward.1} parent=5 // pred_check
        %p256 = pneg %p255
      $region18: #{mlp_g_text_emb_forward.1} parent=5 // pred_check_branch
        %258 = sbr.rel (%p256) target = $region20
      $region19: #{mlp_g_text_emb_forward.1} parent=5 // pred_region
        // Predicated region
        $region21: #{mlp_g_text_emb_forward.1} parent=19 // pred_check
          %p259 = pneg %p54
        $region22: #{mlp_g_text_emb_forward.1} parent=19 // pred_check_branch
          %261 = sbr.rel (%p259) target = $region24
        $region23: #{mlp_g_text_emb_forward.1} parent=19 // pred_region
          %s262 = smul.u32 2, %s29
          %p263 = scmp.lt.s32.totalorder %s262, 3
          %s264 = scalar_select %p263, %s262, 3
          %s265 = smul.addr %s264, 4
          %s266 = scalar_lea.vmem %s0, %s265
          %s267 = smul.u32 2, %s29
        $region24: #{mlp_g_text_emb_forward.1} parent=19 // pred_fallthru
          _
        // Predicated region
        $region25: #{mlp_g_text_emb_forward.1} parent=19 // pred_check
          %p268 = pneg %p80
        $region26: #{mlp_g_text_emb_forward.1} parent=19 // pred_check_branch
          %270 = sbr.rel (%p268) target = $region28
        $region27: #{mlp_g_text_emb_forward.1} parent=19 // pred_region
          %s271 = smul.u32 2, %s29
          %p272 = scmp.lt.s32.totalorder %s271, 3
          %s273 = scalar_select %p272, %s271, 3
          %s274 = smul.addr %s273, 2
          %s275 = smul.addr %s274, 4
          %s276 = scalar_lea.vmem %s1, %s275
          %s277 = smul.u32 2, %s29
        $region28: #{mlp_g_text_emb_forward.1} parent=19 // pred_fallthru
          _
        // Predicated region
        $region29: #{mlp_g_text_emb_forward.1} parent=19 // pred_check
          %p278 = pneg %p106
        $region30: #{mlp_g_text_emb_forward.1} parent=19 // pred_check_branch
          %280 = sbr.rel (%p278) target = $region32
        $region31: #{mlp_g_text_emb_forward.1} parent=19 // pred_region
          %s281 = sand.u32 %s96, 1
          %s282 = scalar_lea.sflag [#allocation4], %s281
          %s283 = sand.u32 %s96, 1
          %s284 = smul.addr %s283, 64
          %s285 = scalar_lea.vmem [#allocation3], %s284
          %287 = vsyncadd %s282, 0
          %s288 = smul.addr %s30, 4
          %s289 = scalar_lea.hbm %s2, %s288
          %s290 = sshll.u32 %s289, 4
          %s291 = int_to_ptr.hbm [resolvable:$true] %s290
          %s292 = sshll.u32 %s285, 4
          %s293 = int_to_ptr.vmem [resolvable:$true] %s292
          %298 = dma.hbm_to_vmem [thread:$0]  %s291, 1024, %s293, %s282, 256, 64, 4
        $region32: #{mlp_g_text_emb_forward.1} parent=19 // pred_fallthru
          _
        // Predicated region
        $region33: #{mlp_g_text_emb_forward.1} parent=19 // pred_check
          %p299 = pneg %p132
        $region34: #{mlp_g_text_emb_forward.1} parent=19 // pred_check_branch
          %301 = sbr.rel (%p299) target = $region36
        $region35: #{mlp_g_text_emb_forward.1} parent=19 // pred_region
          %s302 = sand.u32 %s22, 1
          %s303 = scalar_lea.sflag [#allocation7], %s302
          %s304 = sand.u32 %s122, 1
          %s305 = smul.addr %s304, 128
          %s306 = scalar_lea.vmem [#allocation6], %s305
          %308 = vsyncadd %s303, 0
          %s309 = smul.addr %s30, 4
          %s310 = scalar_lea.hbm %s3, %s309
          %s311 = sshll.u32 %s310, 4
          %s312 = int_to_ptr.hbm [resolvable:$true] %s311
          %s313 = sshll.u32 %s306, 4
          %s314 = int_to_ptr.vmem [resolvable:$true] %s313
          %319 = dma.hbm_to_vmem [thread:$0]  %s312, 2048, %s314, %s303, 256, 64, 4
        $region36: #{mlp_g_text_emb_forward.1} parent=19 // pred_fallthru
          _
        // Predicated region
        $region37: #{mlp_g_text_emb_forward.1} parent=19 // pred_check
          %p320 = pneg %p158
        $region38: #{mlp_g_text_emb_forward.1} parent=19 // pred_check_branch
          %322 = sbr.rel (%p320) target = $region40
        $region39: #{mlp_g_text_emb_forward.1} parent=19 // pred_region
          %p323 = scmp.lt.s32.totalorder %s30, 3
          %s324 = scalar_select %p323, %s30, 3
          %s325 = scalar_lea.vmem %s4, %s324
        $region40: #{mlp_g_text_emb_forward.1} parent=19 // pred_fallthru
          _
        // Predicated region
        $region41: #{mlp_g_text_emb_forward.1} parent=19 // pred_check
          %p326 = pneg %p184
        $region42: #{mlp_g_text_emb_forward.1} parent=19 // pred_check_branch
          %328 = sbr.rel (%p326) target = $region44
        $region43: #{mlp_g_text_emb_forward.1} parent=19 // pred_region
          %s329 = sand.u32 %s22, 1
          %s330 = scalar_lea.sflag [#allocation7], %s329
          %s331 = sand.u32 %s174, 1
          %s332 = smul.addr %s331, 128
          %s333 = scalar_lea.vmem [#allocation8], %s332
          %s334 = smul.u32 16, %s30
          %336 = vsyncadd %s330, 0
          %s337 = smul.addr %s334, 2
          %s338 = smul.addr %s337, 4
          %s339 = scalar_lea.hbm %s5, %s338
          %s340 = sshll.u32 %s339, 4
          %s341 = int_to_ptr.hbm [resolvable:$true] %s340
          %s342 = sshll.u32 %s333, 4
          %s343 = int_to_ptr.vmem [resolvable:$true] %s342
          %348 = dma.hbm_to_vmem [thread:$0]  %s341, 2048, %s343, %s330, 128, 128, 8
        $region44: #{mlp_g_text_emb_forward.1} parent=19 // pred_fallthru
          _
      $region20: #{mlp_g_text_emb_forward.1} parent=5 // pred_fallthru
        _
      %p349 = scmp.le.s32.totalorder 1, %s22
      %p350 = scmp.lt.s32.totalorder %s22, 9
      %p351 = pnand %p349, %p350
      %p352 = pneg %p351
      // Predicated region
      $region45: #{mlp_g_text_emb_forward.1} parent=5 // pred_check
        _
      $region46: #{mlp_g_text_emb_forward.1} parent=5 // pred_check_branch
        %354 = sbr.rel (%p351) target = $region48
      $region47: #{mlp_g_text_emb_forward.1} parent=5 // pred_region
        %s355 = ssub.s32 %s22, 1
        %s356 = sand.u32 %s99, 1
        %s357 = scalar_lea.sflag [#allocation4], %s356
        %s358 = sand.u32 %s99, 1
        %s359 = smul.addr %s358, 64
        %s360 = scalar_lea.vmem [#allocation3], %s359
        // Predicated region
        $region49: #{mlp_g_text_emb_forward.1} parent=47 // pred_check
          %p361 = pneg %p112
        $region50: #{mlp_g_text_emb_forward.1} parent=47 // pred_check_branch
          %363 = sbr.rel (%p361) target = $region52
        $region51: #{mlp_g_text_emb_forward.1} parent=47 // pred_region
          %365 = dma.done %s357, 1024
        $region52: #{mlp_g_text_emb_forward.1} parent=47 // pred_fallthru
          _
        %s366 = sand.u32 %s27, 1
        %s367 = scalar_lea.sflag [#allocation7], %s366
        %s368 = sand.u32 %s125, 1
        %s369 = smul.addr %s368, 128
        %s370 = scalar_lea.vmem [#allocation6], %s369
        // Predicated region
        $region53: #{mlp_g_text_emb_forward.1} parent=47 // pred_check
          %p371 = pneg %p138
        $region54: #{mlp_g_text_emb_forward.1} parent=47 // pred_check_branch
          %373 = sbr.rel (%p371) target = $region56
        $region55: #{mlp_g_text_emb_forward.1} parent=47 // pred_region
          %375 = dma.done %s367, 2048
        $region56: #{mlp_g_text_emb_forward.1} parent=47 // pred_fallthru
          _
        %s376 = sand.u32 %s27, 1
        %s377 = scalar_lea.sflag [#allocation7], %s376
        %s378 = sand.u32 %s177, 1
        %s379 = smul.addr %s378, 128
        %s380 = scalar_lea.vmem [#allocation8], %s379
        // Predicated region
        $region57: #{mlp_g_text_emb_forward.1} parent=47 // pred_check
          %p381 = pneg %p190
        $region58: #{mlp_g_text_emb_forward.1} parent=47 // pred_check_branch
          %383 = sbr.rel (%p381) target = $region60
        $region59: #{mlp_g_text_emb_forward.1} parent=47 // pred_region
          %385 = dma.done %s377, 2048
        $region60: #{mlp_g_text_emb_forward.1} parent=47 // pred_fallthru
          _
        %s386 = smul.u32 2, %s31
        %p387 = scmp.lt.s32.totalorder %s386, 3
        %s388 = scalar_select %p387, %s386, 3
        %s389 = smul.addr %s388, 4
        %s390 = scalar_lea.vmem %s0, %s389
        %p391 = pneg %p60
        %p392 = pneg %p57
        %s393 = smul.u32 2, %s31
        %p394 = scmp.lt.s32.totalorder %s393, 3
        %s395 = scalar_select %p394, %s393, 3
        %s396 = smul.addr %s395, 2
        %s397 = smul.addr %s396, 4
        %s398 = scalar_lea.vmem %s1, %s397
        %p399 = pneg %p86
        %p400 = pneg %p83
        %s401 = sand.u32 %s99, 1
        %s402 = scalar_lea.sflag [#allocation4], %s401
        %s403 = sand.u32 %s99, 1
        %s404 = smul.addr %s403, 64
        %s405 = scalar_lea.vmem [#allocation3], %s404
        %p406 = pneg %p112
        %p407 = pneg %p109
        %s408 = sand.u32 %s27, 1
        %s409 = scalar_lea.sflag [#allocation7], %s408
        %s410 = sand.u32 %s125, 1
        %s411 = smul.addr %s410, 128
        %s412 = scalar_lea.vmem [#allocation6], %s411
        %p413 = pneg %p138
        %p414 = pneg %p135
        %p415 = scmp.lt.s32.totalorder %s32, 3
        %s416 = scalar_select %p415, %s32, 3
        %s417 = scalar_lea.vmem %s4, %s416
        %p418 = pneg %p164
        %p419 = pneg %p161
        %s420 = sand.u32 %s27, 1
        %s421 = scalar_lea.sflag [#allocation7], %s420
        %s422 = sand.u32 %s177, 1
        %s423 = smul.addr %s422, 128
        %s424 = scalar_lea.vmem [#allocation8], %s423
        %p425 = pneg %p190
        %p426 = pneg %p187
        %p427 = pneg %p211
        %p428 = pneg %p208
        %p429 = pneg %p237
        %p430 = pneg %p234
        %s431 = sand.u32 %s224, 1
        %s432 = scalar_lea.sflag [#allocation5], %s431
        %s433 = sand.u32 %s224, 1
        %s434 = smul.addr %s433, 32
        %s435 = scalar_lea.vmem [#allocation9], %s434
        %s436 = smul.u32 2, %s31
        %p437 = scmp.lt.s32.totalorder %s436, 3
        %s438 = scalar_select %p437, %s436, 3
        %s439 = smul.addr %s438, 4
        %s440 = scalar_lea.vmem %s0, %s439
        %s441 = smul.u32 2, %s31
        %s442 = smul.u32 2, %s31
        %p443 = scmp.lt.s32.totalorder %s442, 3
        %s444 = scalar_select %p443, %s442, 3
        %s445 = smul.addr %s444, 2
        %s446 = smul.addr %s445, 4
        %s447 = scalar_lea.vmem %s1, %s446
        %s448 = smul.u32 2, %s31
        %p449 = scmp.lt.s32.totalorder %s32, 3
        %s450 = scalar_select %p449, %s32, 3
        %s451 = scalar_lea.vmem %s4, %s450
        %s452 = smul.u32 16, %s32
        %s453 = smul.u32 2, %s31
        %p454 = scmp.eq.s32.totalorder %s32, 0
        // Predicated region
        $region61: #{mlp_g_text_emb_forward.1} parent=47 // pred_check
          %p455 = pneg %p454
        $region62: #{mlp_g_text_emb_forward.1} parent=47 // pred_check_branch
          %457 = sbr.rel (%p455) target = $region64
        $region63: #{mlp_g_text_emb_forward.1} parent=47 // pred_region
          %458 = vst [vmem:[#allocation2] sm:$0xff] 0.0
          %459 = vst [vmem:[#allocation2 + $0x8] sm:$0xff] 0.0
          %460 = vst [vmem:[#allocation2 + $0x10] sm:$0xff] 0.0
          %461 = vst [vmem:[#allocation2 + $0x18] sm:$0xff] 0.0
        $region64: #{mlp_g_text_emb_forward.1} parent=47 // pred_fallthru
          _
        %v462 = vld [vmem:[%s440] sm:$0xf]
        %v463 = vld [vmem:[%s440 + $0x4] sm:$0xf]
        %v464 = vld [vmem:[%s360] sm:$0xf]
        %v465 = vld [vmem:[%s360 + $0x4] sm:$0xf]
        %v466 = vld [vmem:[%s360 + $0x8] sm:$0xf]
        %v467 = vld [vmem:[%s360 + $0xc] sm:$0xf]
        %v468 = vld [vmem:[%s360 + $0x10] sm:$0xf]
        %v469 = vld [vmem:[%s360 + $0x14] sm:$0xf]
        %v470 = vld [vmem:[%s360 + $0x18] sm:$0xf]
        %v471 = vld [vmem:[%s360 + $0x1c] sm:$0xf]
        %v472 = vld [vmem:[%s360 + $0x20] sm:$0xf]
        %v473 = vld [vmem:[%s360 + $0x24] sm:$0xf]
        %v474 = vld [vmem:[%s360 + $0x28] sm:$0xf]
        %v475 = vld [vmem:[%s360 + $0x2c] sm:$0xf]
        %v476 = vld [vmem:[%s360 + $0x30] sm:$0xf]
        %v477 = vld [vmem:[%s360 + $0x34] sm:$0xf]
        %v478 = vld [vmem:[%s360 + $0x38] sm:$0xf]
        %v479 = vld [vmem:[%s360 + $0x3c] sm:$0xf]
        %v480 = vld [vmem:[%s447] sm:$0xff]
        %v481 = vld [vmem:[%s447 + $0x8] sm:$0xff]
        %v482 = vld [vmem:[%s370] sm:$0xf]
        %v483 = vld [vmem:[%s370 + $0x4] sm:$0xf]
        %v484 = vld [vmem:[%s370 + $0x8] sm:$0xf]
        %v485 = vld [vmem:[%s370 + $0xc] sm:$0xf]
        %v486 = vld [vmem:[%s370 + $0x10] sm:$0xf]
        %v487 = vld [vmem:[%s370 + $0x14] sm:$0xf]
        %v488 = vld [vmem:[%s370 + $0x18] sm:$0xf]
        %v489 = vld [vmem:[%s370 + $0x1c] sm:$0xf]
        %v490 = vld [vmem:[%s370 + $0x20] sm:$0xf]
        %v491 = vld [vmem:[%s370 + $0x24] sm:$0xf]
        %v492 = vld [vmem:[%s370 + $0x28] sm:$0xf]
        %v493 = vld [vmem:[%s370 + $0x2c] sm:$0xf]
        %v494 = vld [vmem:[%s370 + $0x30] sm:$0xf]
        %v495 = vld [vmem:[%s370 + $0x34] sm:$0xf]
        %v496 = vld [vmem:[%s370 + $0x38] sm:$0xf]
        %v497 = vld [vmem:[%s370 + $0x3c] sm:$0xf]
        %v498 = vld [vmem:[%s370 + $0x40] sm:$0xf]
        %v499 = vld [vmem:[%s370 + $0x44] sm:$0xf]
        %v500 = vld [vmem:[%s370 + $0x48] sm:$0xf]
        %v501 = vld [vmem:[%s370 + $0x4c] sm:$0xf]
        %v502 = vld [vmem:[%s370 + $0x50] sm:$0xf]
        %v503 = vld [vmem:[%s370 + $0x54] sm:$0xf]
        %v504 = vld [vmem:[%s370 + $0x58] sm:$0xf]
        %v505 = vld [vmem:[%s370 + $0x5c] sm:$0xf]
        %v506 = vld [vmem:[%s370 + $0x60] sm:$0xf]
        %v507 = vld [vmem:[%s370 + $0x64] sm:$0xf]
        %v508 = vld [vmem:[%s370 + $0x68] sm:$0xf]
        %v509 = vld [vmem:[%s370 + $0x6c] sm:$0xf]
        %v510 = vld [vmem:[%s370 + $0x70] sm:$0xf]
        %v511 = vld [vmem:[%s370 + $0x74] sm:$0xf]
        %v512 = vld [vmem:[%s370 + $0x78] sm:$0xf]
        %v513 = vld [vmem:[%s370 + $0x7c] sm:$0xf]
        %v516 = vunpack.c.l.b16 %v480
        %v517 = vunpack.c.h.b16 %v480
        %v518 = vunpack.c.l.b16 %v481
        %v519 = vunpack.c.h.b16 %v481
        %v520 = vpack.c.b16 %v518, %v516
        %v521 = vpack.c.b16 %v519, %v517
        %v556 = vunpack.c.l.b16 %v482
        %v557 = vunpack.c.l.b16 %v483
        %v558 = vunpack.c.l.b16 %v484
        %v559 = vunpack.c.l.b16 %v485
        %v560 = vunpack.c.l.b16 %v486
        %v561 = vunpack.c.l.b16 %v487
        %v562 = vunpack.c.l.b16 %v488
        %v563 = vunpack.c.l.b16 %v489
        %v564 = vunpack.c.l.b16 %v490
        %v565 = vunpack.c.l.b16 %v491
        %v566 = vunpack.c.l.b16 %v492
        %v567 = vunpack.c.l.b16 %v493
        %v568 = vunpack.c.l.b16 %v494
        %v569 = vunpack.c.l.b16 %v495
        %v570 = vunpack.c.l.b16 %v496
        %v571 = vunpack.c.l.b16 %v497
        %v572 = vunpack.c.l.b16 %v498
        %v573 = vunpack.c.l.b16 %v499
        %v574 = vunpack.c.l.b16 %v500
        %v575 = vunpack.c.l.b16 %v501
        %v576 = vunpack.c.l.b16 %v502
        %v577 = vunpack.c.l.b16 %v503
        %v578 = vunpack.c.l.b16 %v504
        %v579 = vunpack.c.l.b16 %v505
        %v580 = vunpack.c.l.b16 %v506
        %v581 = vunpack.c.l.b16 %v507
        %v582 = vunpack.c.l.b16 %v508
        %v583 = vunpack.c.l.b16 %v509
        %v584 = vunpack.c.l.b16 %v510
        %v585 = vunpack.c.l.b16 %v511
        %v586 = vunpack.c.l.b16 %v512
        %v587 = vunpack.c.l.b16 %v513
        %v588 = vpack.c.b16 %v557, %v556
        %v589 = vpack.c.b16 %v559, %v558
        %v590 = vpack.c.b16 %v561, %v560
        %v591 = vpack.c.b16 %v563, %v562
        %v592 = vpack.c.b16 %v565, %v564
        %v593 = vpack.c.b16 %v567, %v566
        %v594 = vpack.c.b16 %v569, %v568
        %v595 = vpack.c.b16 %v571, %v570
        %v596 = vpack.c.b16 %v573, %v572
        %v597 = vpack.c.b16 %v575, %v574
        %v598 = vpack.c.b16 %v577, %v576
        %v599 = vpack.c.b16 %v579, %v578
        %v600 = vpack.c.b16 %v581, %v580
        %v601 = vpack.c.b16 %v583, %v582
        %v602 = vpack.c.b16 %v585, %v584
        %v603 = vpack.c.b16 %v587, %v586
        %620 = vmatpush.bf16.msra.mxu0 %v595
        %621 = vmatpush.bf16.msra.mxu0 %v594
        %622 = vmatpush.bf16.msra.mxu0 %v593
        %623 = vmatpush.bf16.msra.mxu0 %v592
        %624 = vmatpush.bf16.msra.mxu0 %v591
        %625 = vmatpush.bf16.msra.mxu0 %v590
        %626 = vmatpush.bf16.msra.mxu0 %v589
        %627 = vmatpush.bf16.msra.mxu0 %v588
        %628 = vmatmul.bf16.gmra.mxu0 %v520
        %v629 = vpop.f32.mrf.mxu0
        %v630 = vadd.f32 0.0, %v629
        %v631 = vpop.f32.mrf.mxu0
        %v632 = vadd.f32 0.0, %v631
        %633 = vdwg.mxu0
        %634 = vmatpush.bf16.msra.mxu0 %v603
        %635 = vmatpush.bf16.msra.mxu0 %v602
        %636 = vmatpush.bf16.msra.mxu0 %v601
        %637 = vmatpush.bf16.msra.mxu0 %v600
        %638 = vmatpush.bf16.msra.mxu0 %v599
        %639 = vmatpush.bf16.msra.mxu0 %v598
        %640 = vmatpush.bf16.msra.mxu0 %v597
        %641 = vmatpush.bf16.msra.mxu0 %v596
        %642 = vmatmul.bf16.gmra.mxu0 %v521
        %v643 = vpop.f32.mrf.mxu0
        %v644 = vadd.f32 %v630, %v643
        %v645 = vpop.f32.mrf.mxu0
        %v646 = vadd.f32 %v632, %v645
        %647 = vdwg.mxu0
        %v650 = vunpack.c.l.b16 %v462
        %v651 = vunpack.c.l.b16 %v463
        %v652 = vpack.c.b16 %v651, %v650
        %v670 = vunpack.c.l.b16 %v464
        %v671 = vunpack.c.l.b16 %v465
        %v672 = vunpack.c.l.b16 %v466
        %v673 = vunpack.c.l.b16 %v467
        %v674 = vunpack.c.l.b16 %v468
        %v675 = vunpack.c.l.b16 %v469
        %v676 = vunpack.c.l.b16 %v470
        %v677 = vunpack.c.l.b16 %v471
        %v678 = vunpack.c.l.b16 %v472
        %v679 = vunpack.c.l.b16 %v473
        %v680 = vunpack.c.l.b16 %v474
        %v681 = vunpack.c.l.b16 %v475
        %v682 = vunpack.c.l.b16 %v476
        %v683 = vunpack.c.l.b16 %v477
        %v684 = vunpack.c.l.b16 %v478
        %v685 = vunpack.c.l.b16 %v479
        %v686 = vpack.c.b16 %v671, %v670
        %v687 = vpack.c.b16 %v673, %v672
        %v688 = vpack.c.b16 %v675, %v674
        %v689 = vpack.c.b16 %v677, %v676
        %v690 = vpack.c.b16 %v679, %v678
        %v691 = vpack.c.b16 %v681, %v680
        %v692 = vpack.c.b16 %v683, %v682
        %v693 = vpack.c.b16 %v685, %v684
        %702 = vmatpush.bf16.msra.mxu0 %v693
        %703 = vmatpush.bf16.msra.mxu0 %v692
        %704 = vmatpush.bf16.msra.mxu0 %v691
        %705 = vmatpush.bf16.msra.mxu0 %v690
        %706 = vmatpush.bf16.msra.mxu0 %v689
        %707 = vmatpush.bf16.msra.mxu0 %v688
        %708 = vmatpush.bf16.msra.mxu0 %v687
        %709 = vmatpush.bf16.msra.mxu0 %v686
        %710 = vmatmul.bf16.gmra.mxu0 %v652
        %v711 = vpop.f32.mrf.mxu0
        %v712 = vadd.f32 %v644, %v711
        %v713 = vpop.f32.mrf.mxu0
        %v714 = vadd.f32 %v646, %v713
        %715 = vdwg.mxu0
        %v716 = vld [vmem:[%s451] sm:$0x1]
        %v718 = vperm.slane %v716, 0
        %v720 = vadd.f32 %v712, %v718
        %v721 = vadd.f32 %v714, %v718
        %vm722 = vcmp.gt.f32.partialorder %v720, 0.0
        %vm723 = vcmp.gt.f32.partialorder %v721, 0.0
        %v724 = vmul.f32 %v720, 0.2
        %v725 = vmul.f32 %v721, 0.2
        %v726 = vsel %vm722, %v720, %v724
        %v727 = vsel %vm723, %v721, %v725
        %v728 = vld [vmem:[#allocation2] sm:$0xff]
        %v729 = vld [vmem:[#allocation2 + $0x8] sm:$0xff]
        %v730 = vld [vmem:[#allocation2 + $0x10] sm:$0xff]
        %v731 = vld [vmem:[#allocation2 + $0x18] sm:$0xff]
        %v732 = vpack.c.bf16 %v727, %v726
        %v733 = vld [vmem:[%s380] sm:$0xff]
        %v734 = vld [vmem:[%s380 + $0x8] sm:$0xff]
        %v735 = vld [vmem:[%s380 + $0x10] sm:$0xff]
        %v736 = vld [vmem:[%s380 + $0x18] sm:$0xff]
        %v737 = vld [vmem:[%s380 + $0x20] sm:$0xff]
        %v738 = vld [vmem:[%s380 + $0x28] sm:$0xff]
        %v739 = vld [vmem:[%s380 + $0x30] sm:$0xff]
        %v740 = vld [vmem:[%s380 + $0x38] sm:$0xff]
        %v741 = vld [vmem:[%s380 + $0x40] sm:$0xff]
        %v742 = vld [vmem:[%s380 + $0x48] sm:$0xff]
        %v743 = vld [vmem:[%s380 + $0x50] sm:$0xff]
        %v744 = vld [vmem:[%s380 + $0x58] sm:$0xff]
        %v745 = vld [vmem:[%s380 + $0x60] sm:$0xff]
        %v746 = vld [vmem:[%s380 + $0x68] sm:$0xff]
        %v747 = vld [vmem:[%s380 + $0x70] sm:$0xff]
        %v748 = vld [vmem:[%s380 + $0x78] sm:$0xff]
        %v765 = vunpack.c.l.b16 %v733
        %v766 = vunpack.c.h.b16 %v733
        %v767 = vunpack.c.l.b16 %v734
        %v768 = vunpack.c.h.b16 %v734
        %v769 = vunpack.c.l.b16 %v735
        %v770 = vunpack.c.h.b16 %v735
        %v771 = vunpack.c.l.b16 %v736
        %v772 = vunpack.c.h.b16 %v736
        %v773 = vunpack.c.l.b16 %v737
        %v774 = vunpack.c.h.b16 %v737
        %v775 = vunpack.c.l.b16 %v738
        %v776 = vunpack.c.h.b16 %v738
        %v777 = vunpack.c.l.b16 %v739
        %v778 = vunpack.c.h.b16 %v739
        %v779 = vunpack.c.l.b16 %v740
        %v780 = vunpack.c.h.b16 %v740
        %v781 = vunpack.c.l.b16 %v741
        %v782 = vunpack.c.h.b16 %v741
        %v783 = vunpack.c.l.b16 %v742
        %v784 = vunpack.c.h.b16 %v742
        %v785 = vunpack.c.l.b16 %v743
        %v786 = vunpack.c.h.b16 %v743
        %v787 = vunpack.c.l.b16 %v744
        %v788 = vunpack.c.h.b16 %v744
        %v789 = vunpack.c.l.b16 %v745
        %v790 = vunpack.c.h.b16 %v745
        %v791 = vunpack.c.l.b16 %v746
        %v792 = vunpack.c.h.b16 %v746
        %v793 = vunpack.c.l.b16 %v747
        %v794 = vunpack.c.h.b16 %v747
        %v795 = vunpack.c.l.b16 %v748
        %v796 = vunpack.c.h.b16 %v748
        %v797 = vpack.c.b16 %v767, %v765
        %v798 = vpack.c.b16 %v768, %v766
        %v799 = vpack.c.b16 %v771, %v769
        %v800 = vpack.c.b16 %v772, %v770
        %v801 = vpack.c.b16 %v775, %v773
        %v802 = vpack.c.b16 %v776, %v774
        %v803 = vpack.c.b16 %v779, %v777
        %v804 = vpack.c.b16 %v780, %v778
        %v805 = vpack.c.b16 %v783, %v781
        %v806 = vpack.c.b16 %v784, %v782
        %v807 = vpack.c.b16 %v787, %v785
        %v808 = vpack.c.b16 %v788, %v786
        %v809 = vpack.c.b16 %v791, %v789
        %v810 = vpack.c.b16 %v792, %v790
        %v811 = vpack.c.b16 %v795, %v793
        %v812 = vpack.c.b16 %v796, %v794
        %829 = vmatpush.bf16.msra.mxu0 %v811
        %830 = vmatpush.bf16.msra.mxu0 %v809
        %831 = vmatpush.bf16.msra.mxu0 %v807
        %832 = vmatpush.bf16.msra.mxu0 %v805
        %833 = vmatpush.bf16.msra.mxu0 %v803
        %834 = vmatpush.bf16.msra.mxu0 %v801
        %835 = vmatpush.bf16.msra.mxu0 %v799
        %836 = vmatpush.bf16.msra.mxu0 %v797
        %837 = vmatmul.bf16.gmra.mxu0 %v732
        %v838 = vpop.f32.mrf.mxu0
        %v839 = vadd.f32 0.0, %v838
        %v840 = vpop.f32.mrf.mxu0
        %v841 = vadd.f32 0.0, %v840
        %842 = vdwg.mxu0
        %843 = vmatpush.bf16.msra.mxu0 %v812
        %844 = vmatpush.bf16.msra.mxu0 %v810
        %845 = vmatpush.bf16.msra.mxu0 %v808
        %846 = vmatpush.bf16.msra.mxu0 %v806
        %847 = vmatpush.bf16.msra.mxu0 %v804
        %848 = vmatpush.bf16.msra.mxu0 %v802
        %849 = vmatpush.bf16.msra.mxu0 %v800
        %850 = vmatpush.bf16.msra.mxu0 %v798
        %851 = vmatmul.bf16.gmra.mxu0 %v732
        %v852 = vpop.f32.mrf.mxu0
        %v853 = vadd.f32 0.0, %v852
        %v854 = vpop.f32.mrf.mxu0
        %v855 = vadd.f32 0.0, %v854
        %856 = vdwg.mxu0
        %v857 = vadd.f32 %v728, %v839
        %v858 = vadd.f32 %v729, %v853
        %v859 = vadd.f32 %v730, %v841
        %v860 = vadd.f32 %v731, %v855
        %861 = vst [vmem:[#allocation2] sm:$0xff] %v857
        %862 = vst [vmem:[#allocation2 + $0x8] sm:$0xff] %v858
        %863 = vst [vmem:[#allocation2 + $0x10] sm:$0xff] %v859
        %864 = vst [vmem:[#allocation2 + $0x18] sm:$0xff] %v860
        %p865 = scmp.eq.s32.totalorder %s32, 3
        // Predicated region
        $region65: #{mlp_g_text_emb_forward.1} parent=47 // pred_check
          %p866 = pneg %p865
        $region66: #{mlp_g_text_emb_forward.1} parent=47 // pred_check_branch
          %868 = sbr.rel (%p866) target = $region68
        $region67: #{mlp_g_text_emb_forward.1} parent=47 // pred_region
          %v869 = vld [vmem:[#allocation2] sm:$0xff]
          %v870 = vld [vmem:[#allocation2 + $0x8] sm:$0xff]
          %v871 = vld [vmem:[#allocation2 + $0x10] sm:$0xff]
          %v872 = vld [vmem:[#allocation2 + $0x18] sm:$0xff]
          %v873 = vld [vmem:[%s6] sm:$0x3]
          %v875 = vperm.slane %v873, 0
          %v876 = vperm.slane %v873, 1
          %v879 = vadd.f32 %v869, %v875
          %v880 = vadd.f32 %v870, %v876
          %v881 = vadd.f32 %v871, %v875
          %v882 = vadd.f32 %v872, %v876
          %v883 = vmax.f32 %v879, 0.0
          %v884 = vmax.f32 %v880, 0.0
          %v885 = vmax.f32 %v881, 0.0
          %v886 = vmax.f32 %v882, 0.0
          %887 = vst [vmem:[%s435] sm:$0xff] %v883
          %888 = vst [vmem:[%s435 + $0x8] sm:$0xff] %v884
          %889 = vst [vmem:[%s435 + $0x10] sm:$0xff] %v885
          %890 = vst [vmem:[%s435 + $0x18] sm:$0xff] %v886
        $region68: #{mlp_g_text_emb_forward.1} parent=47 // pred_fallthru
          _
        %s891 = sand.u32 %s224, 1
        %s892 = scalar_lea.sflag [#allocation5], %s891
        %s893 = sand.u32 %s224, 1
        %s894 = smul.addr %s893, 32
        %s895 = scalar_lea.vmem [#allocation9], %s894
        // Predicated region
        $region69: #{mlp_g_text_emb_forward.1} parent=47 // pred_check
          %p896 = pneg %p234
        $region70: #{mlp_g_text_emb_forward.1} parent=47 // pred_check_branch
          %898 = sbr.rel (%p896) target = $region72
        $region71: #{mlp_g_text_emb_forward.1} parent=47 // pred_region
          %s899 = smul.u32 2, %s31
          %901 = vsyncadd %s892, 0
          %s902 = smul.addr %s899, 2
          %s903 = smul.addr %s902, 8
          %s904 = scalar_lea.hbm %s7, %s903
          %s905 = sshll.u32 %s895, 4
          %s906 = int_to_ptr.vmem [resolvable:$true] %s905
          %s907 = sshll.u32 %s904, 4
          %s908 = int_to_ptr.hbm [resolvable:$true] %s907
          %913 = dma.vmem_to_hbm [thread:$0]  %s906, 512, %s908, %s892, 256, 256, 16
        $region72: #{mlp_g_text_emb_forward.1} parent=47 // pred_fallthru
          _
      $region48: #{mlp_g_text_emb_forward.1} parent=5 // pred_fallthru
        _
      %p914 = scmp.le.s32.totalorder 2, %s22
      // Predicated region
      $region73: #{mlp_g_text_emb_forward.1} parent=5 // pred_check
        %p915 = pneg %p914
      $region74: #{mlp_g_text_emb_forward.1} parent=5 // pred_check_branch
        %917 = sbr.rel (%p915) target = $region76
      $region75: #{mlp_g_text_emb_forward.1} parent=5 // pred_region
        %s918 = ssub.s32 %s22, 2
        // Predicated region
        $region77: #{mlp_g_text_emb_forward.1} parent=75 // pred_check
          %p919 = pneg %p240
        $region78: #{mlp_g_text_emb_forward.1} parent=75 // pred_check_branch
          %921 = sbr.rel (%p919) target = $region80
        $region79: #{mlp_g_text_emb_forward.1} parent=75 // pred_region
          %s922 = sand.u32 %s225, 1
          %s923 = scalar_lea.sflag [#allocation5], %s922
          %s924 = sand.u32 %s225, 1
          %s925 = smul.addr %s924, 32
          %s926 = scalar_lea.vmem [#allocation9], %s925
          %928 = dma.done %s923, 512
        $region80: #{mlp_g_text_emb_forward.1} parent=75 // pred_fallthru
          _
      $region76: #{mlp_g_text_emb_forward.1} parent=5 // pred_fallthru
        _
    $region6: #{mlp_g_text_emb_forward.1} parent=1 // loop_footer
      %s26 = sadd.s32 1, %s22
    $region7: #{mlp_g_text_emb_forward.1} parent=1 // loop_footer_branch
      %21 = sbr.rel target = $region3
    $region8: #{mlp_g_text_emb_forward.1} parent=1 // loop_exit
      _
    %929 = vsyncpa [#allocation4], 1
    %s930 = scalar_lea.sflag [#allocation4], 1
    %931 = vsyncpa %s930, 1
    %932 = vsyncpa [#allocation7], 1
    %s933 = scalar_lea.sflag [#allocation7], 1
    %934 = vsyncpa %s933, 1
    %935 = vsyncpa [#allocation5], 1
    %s936 = scalar_lea.sflag [#allocation5], 1
    %937 = vsyncpa %s936, 1

</llo_original>
